<compile_context>
chip_gen: v7x
topology: tpu7x:2x2x1
jax: 0.10.0
libtpu: 0.0.40
codegen_flags: <defaults>
</compile_context>

<pallas_src>
import jax
import jax.numpy as jnp
from jax.experimental import pallas as pl
from jax.experimental.pallas import tpu as pltpu

KERNEL_SIZE = 4  # EquiangularAvgUnpool.kernel_size


def equiangular_dimension_unpack(nodes, ratio):
    """dim1 (latitude) x dim2 (longitude) factorization used by deepsphere."""
    dim1 = int(round((nodes / ratio) ** 0.5))
    dim2 = int(round((nodes * ratio) ** 0.5))
    if dim1 * dim2 != nodes:
        raise ValueError("number of pixels is not compatible with the given ratio")
    return dim1, dim2


def _pick_row_tile(rows, d2, feat, itemsize, budget_bytes=40 * 1024 * 1024):
    """Largest divisor of `rows` whose padded VMEM footprint fits `budget_bytes`.

    Footprint accounts for double-buffered input + output blocks plus the
    4x lane-concat temporary inside the kernel.  Also keeps >= 2 grid steps
    (when rows >= 2) so v7x megacore has work for both TensorCores.
    """
    k = KERNEL_SIZE
    sub = 8 * max(1, 4 // itemsize)                  # f32 -> 8, bf16 -> 16, int8 -> 32
    d2_pad = -(-d2 // sub) * sub                     # sublane padding
    f_in = -(-feat // 128) * 128                     # lane padding (input)
    f_out = -(-(k * feat) // 128) * 128              # lane padding (output / temp)
    in_row = d2_pad * f_in * itemsize
    out_row = k * d2_pad * f_out * itemsize
    tmp_row = d2_pad * f_out * itemsize              # lane-concat temporary
    per_row = 2 * (in_row + out_row) + tmp_row       # 2x = double buffering
    min_steps = 2 if rows >= 2 else 1
    best = 1
    for tr in range(1, rows + 1):
        if rows % tr:
            continue
        if rows // tr < min_steps:
            continue
        if tr * per_row <= budget_bytes:
            best = tr
    return best


def _unpool_kernel(x_ref, o_ref):
    # x_ref: (tr, d2, F) input tile;  o_ref: (tr, 4, d2, 4*F) output tile.
    k = KERNEL_SIZE
    x = x_ref[...]                                    # (tr, d2, F)
    # Longitude repeat folded onto the lane axis -> one wide (4*F-lane) slab.
    y = jnp.concatenate([x] * k, axis=-1)             # (tr, d2, 4*F)
    # Latitude repeat = 4 direct wide, unmasked stores (no 16x temporary).
    for a in range(k):
        o_ref[:, a, :, :] = y.astype(o_ref.dtype)


def equiangular_avg_unpool(x, ratio=1.0):
    """Pallas implementation of EquiangularAvgUnpool(ratio).forward(x).

    x: (N, pixels, F)  ->  (N, 16 * pixels, F)
    """
    N, M, F = x.shape
    d1, d2 = equiangular_dimension_unpack(M, ratio)
    k = KERNEL_SIZE

    rows = N * d1
    x3 = x.reshape(rows, d2, F)                       # contiguous view (free)
    tr = _pick_row_tile(rows, d2, F, x.dtype.itemsize)
    grid = (rows // tr,)

    out = pl.pallas_call(
        _unpool_kernel,
        out_shape=jax.ShapeDtypeStruct((rows, k, d2, k * F), x.dtype),
        grid=grid,
        in_specs=[
            pl.BlockSpec((tr, d2, F), lambda i: (i, 0, 0)),
        ],
        out_specs=pl.BlockSpec((tr, k, d2, k * F), lambda i: (i, 0, 0, 0)),
        compiler_params=pltpu.CompilerParams(
            dimension_semantics=("parallel",),
            vmem_limit_bytes=48 * 1024 * 1024,
        ),
        cost_estimate=pl.CostEstimate(
            flops=0,
            transcendentals=0,
            bytes_accessed=17 * x.size * x.dtype.itemsize,  # read 1x, write 16x
        ),
    )(x3)

    # (rows, 4, d2, 4F) is byte-identical to (N, 4*d1, 4*d2, F) -> free views.
    return out.reshape(N, k * k * M, F)


def _reference_unpool(x, ratio=1.0):
    """Pure-JAX reference mirroring the PyTorch forward exactly."""
    N, M, F = x.shape
    d1, d2 = equiangular_dimension_unpack(M, ratio)
    k = KERNEL_SIZE
    img = x.reshape(N, d1, d2, F)             # equiangular_calculator view
    img = jnp.repeat(img, k, axis=1)          # nearest upsample along lat
    img = jnp.repeat(img, k, axis=2)          # nearest upsample along lon
    return img.reshape(N, d1 * k * d2 * k, F)  # reformat


if __name__ == "__main__":
    key = jax.random.PRNGKey(0)
    N, d1, d2, F = 2, 8, 8, 128               # ratio = 1 -> pixels = 64, lane-dense F
    ratio = 1.0
    x = jax.random.normal(key, (N, d1 * d2, F), dtype=jnp.float32)

    out = equiangular_avg_unpool(x, ratio=ratio)
    out = jax.block_until_ready(out)

    ref = _reference_unpool(x, ratio=ratio)
    assert out.shape == (N, 16 * d1 * d2, F), out.shape
    assert jnp.array_equal(out, ref), "Pallas kernel mismatch vs reference"

    print("KERNEL_OK")
</pallas_src>

<mosaic_0001>
module attributes {stable_mosaic.version = 11 : i64} {
  func.func @_unpool_kernel(%arg0: i32, %arg1: memref<8x8x128xf32, #tpu.memory_space<vmem>>, %arg2: memref<8x4x8x512xf32, #tpu.memory_space<vmem>>) attributes {dimension_semantics = [#tpu.dimension_semantics<parallel>], iteration_bounds = array<i64: 2>, scalar_prefetch = 0 : i64, scratch_operands = 0 : i64, tpu.core_type = #tpu.core_type<tc>, window_params = [{transform_indices = @transform_0, window_bounds = array<i64: 8, 8, 128>}, {transform_indices = @transform_1, window_bounds = array<i64: 8, 4, 8, 512>}]} {
    %c0 = arith.constant 0 : index
    %c0_0 = arith.constant 0 : index
    %c0_1 = arith.constant 0 : index
    %0 = vector.load %arg1[%c0, %c0_0, %c0_1] : memref<8x8x128xf32, #tpu.memory_space<vmem>>, vector<8x8x128xf32>
    %1 = tpu.concatenate %0, %0, %0, %0 in 2 : vector<8x8x128xf32>, vector<8x8x128xf32>, vector<8x8x128xf32>, vector<8x8x128xf32> -> vector<8x8x512xf32>
    %c0_2 = arith.constant 0 : index
    %c0_3 = arith.constant 0 : index
    %c0_4 = arith.constant 0 : index
    %c0_5 = arith.constant 0 : index
    %2 = vector.load %arg2[%c0_2, %c0_3, %c0_4, %c0_5] : memref<8x4x8x512xf32, #tpu.memory_space<vmem>>, vector<8x1x8x512xf32>
    %3 = vector.shape_cast %2 : vector<8x1x8x512xf32> to vector<8x8x512xf32>
    %4 = vector.shape_cast %1 : vector<8x8x512xf32> to vector<8x1x8x512xf32>
    tpu.vector_store %arg2[%c0_2, %c0_3, %c0_4, %c0_5], %4 {strides = array<i32>} : memref<8x4x8x512xf32, #tpu.memory_space<vmem>>, vector<8x1x8x512xf32>,
    %c0_6 = arith.constant 0 : index
    %c1 = arith.constant 1 : index
    %c0_7 = arith.constant 0 : index
    %c0_8 = arith.constant 0 : index
    %5 = vector.load %arg2[%c0_6, %c1, %c0_7, %c0_8] : memref<8x4x8x512xf32, #tpu.memory_space<vmem>>, vector<8x1x8x512xf32>
    %6 = vector.shape_cast %5 : vector<8x1x8x512xf32> to vector<8x8x512xf32>
    %7 = vector.shape_cast %1 : vector<8x8x512xf32> to vector<8x1x8x512xf32>
    tpu.vector_store %arg2[%c0_6, %c1, %c0_7, %c0_8], %7 {strides = array<i32>} : memref<8x4x8x512xf32, #tpu.memory_space<vmem>>, vector<8x1x8x512xf32>,
    %c0_9 = arith.constant 0 : index
    %c2 = arith.constant 2 : index
    %c0_10 = arith.constant 0 : index
    %c0_11 = arith.constant 0 : index
    %8 = vector.load %arg2[%c0_9, %c2, %c0_10, %c0_11] : memref<8x4x8x512xf32, #tpu.memory_space<vmem>>, vector<8x1x8x512xf32>
    %9 = vector.shape_cast %8 : vector<8x1x8x512xf32> to vector<8x8x512xf32>
    %10 = vector.shape_cast %1 : vector<8x8x512xf32> to vector<8x1x8x512xf32>
    tpu.vector_store %arg2[%c0_9, %c2, %c0_10, %c0_11], %10 {strides = array<i32>} : memref<8x4x8x512xf32, #tpu.memory_space<vmem>>, vector<8x1x8x512xf32>,
    %c0_12 = arith.constant 0 : index
    %c3 = arith.constant 3 : index
    %c0_13 = arith.constant 0 : index
    %c0_14 = arith.constant 0 : index
    %11 = vector.load %arg2[%c0_12, %c3, %c0_13, %c0_14] : memref<8x4x8x512xf32, #tpu.memory_space<vmem>>, vector<8x1x8x512xf32>
    %12 = vector.shape_cast %11 : vector<8x1x8x512xf32> to vector<8x8x512xf32>
    %13 = vector.shape_cast %1 : vector<8x8x512xf32> to vector<8x1x8x512xf32>
    tpu.vector_store %arg2[%c0_12, %c3, %c0_13, %c0_14], %13 {strides = array<i32>} : memref<8x4x8x512xf32, #tpu.memory_space<vmem>>, vector<8x1x8x512xf32>,
    return
  }
  func.func @transform_0(%arg0: i32) -> (i32, i32, i32) {
    %c0_i32 = arith.constant 0 : i32
    %c0_i32_0 = arith.constant 0 : i32
    %c0_i32_1 = arith.constant 0 : i32
    return %arg0, %c0_i32, %c0_i32_0 : i32, i32, i32
  }
  func.func @transform_1(%arg0: i32) -> (i32, i32, i32, i32) {
    %c0_i32 = arith.constant 0 : i32
    %c0_i32_0 = arith.constant 0 : i32
    %c0_i32_1 = arith.constant 0 : i32
    %c0_i32_2 = arith.constant 0 : i32
    return %arg0, %c0_i32, %c0_i32_0, %c0_i32_1 : i32, i32, i32, i32
  }
}

</mosaic_0001>

<llo_original>
// kernel: tpu_custom_call.1
$region0: #{tpu_custom_call.1}
  #allocation0 [shape = 'u32[]', space=smem, size = 0x4, offset = 0x4, fixed_abs, tag = 'smem constant byte address 0x4 - core index']
  #allocation1 [shape = 'u32[144,128]{1,0:T(1,128)}', space=vmem, size = 0x12000, scoped, tag = 'internal scratch']
  %s0 = inlined_call_operand.hbm [shape: f32[16,8,128], index: 0, kind: input, shape index: {}]
  %s1 = inlined_call_operand.hbm [shape: f32[16,4,8,512], index: 1, kind: output, shape index: {}]
  %s2 = sld [smem:[#allocation0]]
  $region41: #{tpu_custom_call.1} parent=0
    _
  %s4 = ssub.s32 1, %s2
  %s5 = scalar_select 0, %s4, %s2
  $region1: #{tpu_custom_call.1} parent=0
    #allocation2 [shape = 'u8[65536]{0}', space=vmem, size = 0x10000, scoped, tag = 'input window, operand 0']
    #allocation3 [shape = 's32[2]{0}', space=sflag, size = 0x8, scoped, tag = 'scoped memory for tpu_custom_call.1']
    #allocation4 [shape = 's32[2]{0}', space=sflag, size = 0x8, scoped, tag = 'scoped memory for tpu_custom_call.1']
    #allocation5 [shape = 'u8[1048576]{0}', space=vmem, size = 0x100000, scoped, tag = 'output window, operand 0']
    %6 = vsyncpa [#allocation3], 0
    %s7 = scalar_lea.sflag [#allocation3], 1
    %8 = vsyncpa %s7, 0
    %9 = vsyncpa [#allocation4], 0
    %s10 = scalar_lea.sflag [#allocation4], 1
    %11 = vsyncpa %s10, 0
    loop: start=0, step=1, limit=4
    $region2: #{tpu_custom_call.1} parent=1 // loop_pre_header
      _
    $region3: #{tpu_custom_call.1} parent=1 // loop_header
      %s13 = sphi 0, %s17
      %p14 = scmp.ge.s32.totalorder %s13, 4
      %s23 = sphi 0, %s25
      %s26 = sphi 0, %s23
      %s27 = sphi 0, %s26
      %s43 = sphi 0, %s27
      %s49 = sphi 0, %s51
      %s52 = sphi 0, %s49
      %s53 = sphi 0, %s52
      %s69 = sphi 0, %s53
    $region4: #{tpu_custom_call.1} parent=1 // loop_header_branch
      %16 = sbr.rel (%p14) target = $region8
    $region5: #{tpu_custom_call.1} parent=1 // loop_body
      %s18 = ssub.s32 %s13, 1
      %s19 = ssub.s32 %s13, 2
      %s20 = sadd.s32 %s13, 1
      %s21 = ssub.s32 %s13, %s20
      %p22 = scmp.eq.s32.totalorder %s21, 0
      %s24 = sadd.s32 %s23, 1
      %s25 = scalar_select %p22, %s23, %s24
      %p28 = pneg %p22
      %p29 = scmp.eq.s32.totalorder %s13, 1
      %p30 = por %p28, %p29
      %p31 = scmp.ne.s32.totalorder %s23, %s26
      %p32 = scmp.eq.s32.totalorder %s13, 0
      %p33 = por %p31, %p32
      %p34 = scmp.ne.s32.totalorder %s23, %s26
      %p35 = scmp.eq.s32.totalorder %s18, 1
      %p36 = por %p34, %p35
      %p37 = scmp.ne.s32.totalorder %s26, %s27
      %p38 = scmp.eq.s32.totalorder %s18, 0
      %p39 = por %p37, %p38
      %p40 = scmp.ne.s32.totalorder %s26, %s27
      %p41 = scmp.eq.s32.totalorder %s19, 1
      %p42 = por %p40, %p41
      %p44 = scmp.ne.s32.totalorder %s27, %s43
      %p45 = scmp.eq.s32.totalorder %s19, 0
      %p46 = por %p44, %p45
      %s47 = ssub.s32 %s13, %s20
      %p48 = scmp.eq.s32.totalorder %s47, 0
      %s50 = sadd.s32 %s49, 1
      %s51 = scalar_select %p48, %s49, %s50
      %p54 = pneg %p48
      %p55 = scmp.eq.s32.totalorder %s13, 1
      %p56 = por %p54, %p55
      %p57 = scmp.ne.s32.totalorder %s49, %s52
      %p58 = scmp.eq.s32.totalorder %s13, 0
      %p59 = por %p57, %p58
      %p60 = scmp.ne.s32.totalorder %s49, %s52
      %p61 = scmp.eq.s32.totalorder %s18, 1
      %p62 = por %p60, %p61
      %p63 = scmp.ne.s32.totalorder %s52, %s53
      %p64 = scmp.eq.s32.totalorder %s18, 0
      %p65 = por %p63, %p64
      %p66 = scmp.ne.s32.totalorder %s52, %s53
      %p67 = scmp.eq.s32.totalorder %s19, 1
      %p68 = por %p66, %p67
      %p70 = scmp.ne.s32.totalorder %s53, %s69
      %p71 = scmp.eq.s32.totalorder %s19, 0
      %p72 = por %p70, %p71
      %p73 = scmp.le.s32.totalorder 1, %s13
      %p74 = scmp.lt.s32.totalorder %s13, 3
      %p75 = pnand %p73, %p74
      %p76 = pneg %p75
      // Predicated region
      $region9: #{tpu_custom_call.1} parent=5 // pred_check
        _
      $region10: #{tpu_custom_call.1} parent=5 // pred_check_branch
        %78 = sbr.rel (%p75) target = $region12
      $region11: #{tpu_custom_call.1} parent=5 // pred_region
        %s79 = ssub.s32 %s13, 1
      $region12: #{tpu_custom_call.1} parent=5 // pred_fallthru
        _
      %p80 = scmp.lt.s32.totalorder %s13, 2
      // Predicated region
      $region13: #{tpu_custom_call.1} parent=5 // pred_check
        %p81 = pneg %p80
      $region14: #{tpu_custom_call.1} parent=5 // pred_check_branch
        %83 = sbr.rel (%p81) target = $region16
      $region15: #{tpu_custom_call.1} parent=5 // pred_region
        // Predicated region
        $region17: #{tpu_custom_call.1} parent=15 // pred_check
          %p84 = pneg %p33
        $region18: #{tpu_custom_call.1} parent=15 // pred_check_branch
          %86 = sbr.rel (%p84) target = $region20
        $region19: #{tpu_custom_call.1} parent=15 // pred_region
          %s87 = sand.u32 %s23, 1
          %s88 = scalar_lea.sflag [#allocation3], %s87
          %s89 = sand.u32 %s23, 1
          %s90 = smul.addr %s89, 64
          %s91 = scalar_lea.vmem [#allocation2], %s90
          %s92 = smul.u32 8, %s13
          %s94 = ssub.s32 1024, 1024
          %95 = vsyncadd %s88, %s94
          %s96 = smul.addr %s92, 128
          %s97 = scalar_lea.hbm %s0, %s96
          %s98 = sshll.u32 %s91, 4
          %s99 = int_to_ptr.vmem [resolvable:$true] %s98
          %104 = dma.hbm_to_vmem [thread:$0]  %s97, 1024, %s99, %s88, 128, 128, 8
        $region20: #{tpu_custom_call.1} parent=15 // pred_fallthru
          _
      $region16: #{tpu_custom_call.1} parent=5 // pred_fallthru
        _
      %p105 = scmp.le.s32.totalorder 1, %s13
      %p106 = scmp.lt.s32.totalorder %s13, 3
      %p107 = pnand %p105, %p106
      %p108 = pneg %p107
      // Predicated region
      $region21: #{tpu_custom_call.1} parent=5 // pred_check
        _
      $region22: #{tpu_custom_call.1} parent=5 // pred_check_branch
        %110 = sbr.rel (%p107) target = $region24
      $region23: #{tpu_custom_call.1} parent=5 // pred_region
        %s111 = ssub.s32 %s13, 1
        %s112 = sand.u32 %s26, 1
        %s113 = scalar_lea.sflag [#allocation3], %s112
        %s114 = sand.u32 %s26, 1
        %s115 = smul.addr %s114, 64
        %s116 = scalar_lea.vmem [#allocation2], %s115
        // Predicated region
        $region25: #{tpu_custom_call.1} parent=23 // pred_check
          %p117 = pneg %p39
        $region26: #{tpu_custom_call.1} parent=23 // pred_check_branch
          %119 = sbr.rel (%p117) target = $region28
        $region27: #{tpu_custom_call.1} parent=23 // pred_region
          %120 = dma.done %s113, 1024
        $region28: #{tpu_custom_call.1} parent=23 // pred_fallthru
          _
        %s121 = sand.u32 %s26, 1
        %s122 = scalar_lea.sflag [#allocation3], %s121
        %s123 = sand.u32 %s26, 1
        %s124 = smul.addr %s123, 64
        %s125 = scalar_lea.vmem [#allocation2], %s124
        %p126 = pneg %p39
        %p127 = pneg %p36
        %p128 = pneg %p65
        %p129 = pneg %p62
        %s130 = sand.u32 %s52, 1
        %s131 = scalar_lea.sflag [#allocation4], %s130
        %s132 = sand.u32 %s52, 1
        %s133 = smul.addr %s132, 1024
        %s134 = scalar_lea.vmem [#allocation5], %s133
        %s135 = smul.u32 8, %s18
        %s136 = smul.u32 8, %s18
        %v137 = vld [vmem:[%s116] sm:$0xff]
        %v138 = vld [vmem:[%s116 + $0x8] sm:$0xff]
        %v139 = vld [vmem:[%s116 + $0x10] sm:$0xff]
        %v140 = vld [vmem:[%s116 + $0x18] sm:$0xff]
        %v141 = vld [vmem:[%s116 + $0x20] sm:$0xff]
        %v142 = vld [vmem:[%s116 + $0x28] sm:$0xff]
        %v143 = vld [vmem:[%s116 + $0x30] sm:$0xff]
        %v144 = vld [vmem:[%s116 + $0x38] sm:$0xff]
        %145 = vst [vmem:[%s134] sm:$0xff] %v137
        %146 = vst [vmem:[%s134 + $0x8] sm:$0xff] %v137
        %147 = vst [vmem:[%s134 + $0x10] sm:$0xff] %v137
        %148 = vst [vmem:[%s134 + $0x18] sm:$0xff] %v137
        %149 = vst [vmem:[%s134 + $0x80] sm:$0xff] %v138
        %150 = vst [vmem:[%s134 + $0x88] sm:$0xff] %v138
        %151 = vst [vmem:[%s134 + $0x90] sm:$0xff] %v138
        %152 = vst [vmem:[%s134 + $0x98] sm:$0xff] %v138
        %153 = vst [vmem:[%s134 + $0x100] sm:$0xff] %v139
        %154 = vst [vmem:[%s134 + $0x108] sm:$0xff] %v139
        %155 = vst [vmem:[%s134 + $0x110] sm:$0xff] %v139
        %156 = vst [vmem:[%s134 + $0x118] sm:$0xff] %v139
        %157 = vst [vmem:[%s134 + $0x180] sm:$0xff] %v140
        %158 = vst [vmem:[%s134 + $0x188] sm:$0xff] %v140
        %159 = vst [vmem:[%s134 + $0x190] sm:$0xff] %v140
        %160 = vst [vmem:[%s134 + $0x198] sm:$0xff] %v140
        %161 = vst [vmem:[%s134 + $0x200] sm:$0xff] %v141
        %162 = vst [vmem:[%s134 + $0x208] sm:$0xff] %v141
        %163 = vst [vmem:[%s134 + $0x210] sm:$0xff] %v141
        %164 = vst [vmem:[%s134 + $0x218] sm:$0xff] %v141
        %165 = vst [vmem:[%s134 + $0x280] sm:$0xff] %v142
        %166 = vst [vmem:[%s134 + $0x288] sm:$0xff] %v142
        %167 = vst [vmem:[%s134 + $0x290] sm:$0xff] %v142
        %168 = vst [vmem:[%s134 + $0x298] sm:$0xff] %v142
        %169 = vst [vmem:[%s134 + $0x300] sm:$0xff] %v143
        %170 = vst [vmem:[%s134 + $0x308] sm:$0xff] %v143
        %171 = vst [vmem:[%s134 + $0x310] sm:$0xff] %v143
        %172 = vst [vmem:[%s134 + $0x318] sm:$0xff] %v143
        %173 = vst [vmem:[%s134 + $0x380] sm:$0xff] %v144
        %174 = vst [vmem:[%s134 + $0x388] sm:$0xff] %v144
        %175 = vst [vmem:[%s134 + $0x390] sm:$0xff] %v144
        %176 = vst [vmem:[%s134 + $0x398] sm:$0xff] %v144
        %s177 = scalar_lea.vmem %s134, 32 [#allocation5]
        %178 = vst [vmem:[%s177] sm:$0xff] %v137
        %179 = vst [vmem:[%s177 + $0x8] sm:$0xff] %v137
        %180 = vst [vmem:[%s177 + $0x10] sm:$0xff] %v137
        %181 = vst [vmem:[%s177 + $0x18] sm:$0xff] %v137
        %182 = vst [vmem:[%s177 + $0x80] sm:$0xff] %v138
        %183 = vst [vmem:[%s177 + $0x88] sm:$0xff] %v138
        %184 = vst [vmem:[%s177 + $0x90] sm:$0xff] %v138
        %185 = vst [vmem:[%s177 + $0x98] sm:$0xff] %v138
        %186 = vst [vmem:[%s177 + $0x100] sm:$0xff] %v139
        %187 = vst [vmem:[%s177 + $0x108] sm:$0xff] %v139
        %188 = vst [vmem:[%s177 + $0x110] sm:$0xff] %v139
        %189 = vst [vmem:[%s177 + $0x118] sm:$0xff] %v139
        %190 = vst [vmem:[%s177 + $0x180] sm:$0xff] %v140
        %191 = vst [vmem:[%s177 + $0x188] sm:$0xff] %v140
        %192 = vst [vmem:[%s177 + $0x190] sm:$0xff] %v140
        %193 = vst [vmem:[%s177 + $0x198] sm:$0xff] %v140
        %194 = vst [vmem:[%s177 + $0x200] sm:$0xff] %v141
        %195 = vst [vmem:[%s177 + $0x208] sm:$0xff] %v141
        %196 = vst [vmem:[%s177 + $0x210] sm:$0xff] %v141
        %197 = vst [vmem:[%s177 + $0x218] sm:$0xff] %v141
        %198 = vst [vmem:[%s177 + $0x280] sm:$0xff] %v142
        %199 = vst [vmem:[%s177 + $0x288] sm:$0xff] %v142
        %200 = vst [vmem:[%s177 + $0x290] sm:$0xff] %v142
        %201 = vst [vmem:[%s177 + $0x298] sm:$0xff] %v142
        %202 = vst [vmem:[%s177 + $0x300] sm:$0xff] %v143
        %203 = vst [vmem:[%s177 + $0x308] sm:$0xff] %v143
        %204 = vst [vmem:[%s177 + $0x310] sm:$0xff] %v143
        %205 = vst [vmem:[%s177 + $0x318] sm:$0xff] %v143
        %206 = vst [vmem:[%s177 + $0x380] sm:$0xff] %v144
        %207 = vst [vmem:[%s177 + $0x388] sm:$0xff] %v144
        %208 = vst [vmem:[%s177 + $0x390] sm:$0xff] %v144
        %209 = vst [vmem:[%s177 + $0x398] sm:$0xff] %v144
        %s210 = scalar_lea.vmem %s134, 64 [#allocation5]
        %211 = vst [vmem:[%s210] sm:$0xff] %v137
        %212 = vst [vmem:[%s210 + $0x8] sm:$0xff] %v137
        %213 = vst [vmem:[%s210 + $0x10] sm:$0xff] %v137
        %214 = vst [vmem:[%s210 + $0x18] sm:$0xff] %v137
        %215 = vst [vmem:[%s210 + $0x80] sm:$0xff] %v138
        %216 = vst [vmem:[%s210 + $0x88] sm:$0xff] %v138
        %217 = vst [vmem:[%s210 + $0x90] sm:$0xff] %v138
        %218 = vst [vmem:[%s210 + $0x98] sm:$0xff] %v138
        %219 = vst [vmem:[%s210 + $0x100] sm:$0xff] %v139
        %220 = vst [vmem:[%s210 + $0x108] sm:$0xff] %v139
        %221 = vst [vmem:[%s210 + $0x110] sm:$0xff] %v139
        %222 = vst [vmem:[%s210 + $0x118] sm:$0xff] %v139
        %223 = vst [vmem:[%s210 + $0x180] sm:$0xff] %v140
        %224 = vst [vmem:[%s210 + $0x188] sm:$0xff] %v140
        %225 = vst [vmem:[%s210 + $0x190] sm:$0xff] %v140
        %226 = vst [vmem:[%s210 + $0x198] sm:$0xff] %v140
        %227 = vst [vmem:[%s210 + $0x200] sm:$0xff] %v141
        %228 = vst [vmem:[%s210 + $0x208] sm:$0xff] %v141
        %229 = vst [vmem:[%s210 + $0x210] sm:$0xff] %v141
        %230 = vst [vmem:[%s210 + $0x218] sm:$0xff] %v141
        %231 = vst [vmem:[%s210 + $0x280] sm:$0xff] %v142
        %232 = vst [vmem:[%s210 + $0x288] sm:$0xff] %v142
        %233 = vst [vmem:[%s210 + $0x290] sm:$0xff] %v142
        %234 = vst [vmem:[%s210 + $0x298] sm:$0xff] %v142
        %235 = vst [vmem:[%s210 + $0x300] sm:$0xff] %v143
        %236 = vst [vmem:[%s210 + $0x308] sm:$0xff] %v143
        %237 = vst [vmem:[%s210 + $0x310] sm:$0xff] %v143
        %238 = vst [vmem:[%s210 + $0x318] sm:$0xff] %v143
        %239 = vst [vmem:[%s210 + $0x380] sm:$0xff] %v144
        %240 = vst [vmem:[%s210 + $0x388] sm:$0xff] %v144
        %241 = vst [vmem:[%s210 + $0x390] sm:$0xff] %v144
        %242 = vst [vmem:[%s210 + $0x398] sm:$0xff] %v144
        %s243 = scalar_lea.vmem %s134, 96 [#allocation5]
        %244 = vst [vmem:[%s243] sm:$0xff] %v137
        %245 = vst [vmem:[%s243 + $0x8] sm:$0xff] %v137
        %246 = vst [vmem:[%s243 + $0x10] sm:$0xff] %v137
        %247 = vst [vmem:[%s243 + $0x18] sm:$0xff] %v137
        %248 = vst [vmem:[%s243 + $0x80] sm:$0xff] %v138
        %249 = vst [vmem:[%s243 + $0x88] sm:$0xff] %v138
        %250 = vst [vmem:[%s243 + $0x90] sm:$0xff] %v138
        %251 = vst [vmem:[%s243 + $0x98] sm:$0xff] %v138
        %252 = vst [vmem:[%s243 + $0x100] sm:$0xff] %v139
        %253 = vst [vmem:[%s243 + $0x108] sm:$0xff] %v139
        %254 = vst [vmem:[%s243 + $0x110] sm:$0xff] %v139
        %255 = vst [vmem:[%s243 + $0x118] sm:$0xff] %v139
        %256 = vst [vmem:[%s243 + $0x180] sm:$0xff] %v140
        %257 = vst [vmem:[%s243 + $0x188] sm:$0xff] %v140
        %258 = vst [vmem:[%s243 + $0x190] sm:$0xff] %v140
        %259 = vst [vmem:[%s243 + $0x198] sm:$0xff] %v140
        %260 = vst [vmem:[%s243 + $0x200] sm:$0xff] %v141
        %261 = vst [vmem:[%s243 + $0x208] sm:$0xff] %v141
        %262 = vst [vmem:[%s243 + $0x210] sm:$0xff] %v141
        %263 = vst [vmem:[%s243 + $0x218] sm:$0xff] %v141
        %264 = vst [vmem:[%s243 + $0x280] sm:$0xff] %v142
        %265 = vst [vmem:[%s243 + $0x288] sm:$0xff] %v142
        %266 = vst [vmem:[%s243 + $0x290] sm:$0xff] %v142
        %267 = vst [vmem:[%s243 + $0x298] sm:$0xff] %v142
        %268 = vst [vmem:[%s243 + $0x300] sm:$0xff] %v143
        %269 = vst [vmem:[%s243 + $0x308] sm:$0xff] %v143
        %270 = vst [vmem:[%s243 + $0x310] sm:$0xff] %v143
        %271 = vst [vmem:[%s243 + $0x318] sm:$0xff] %v143
        %272 = vst [vmem:[%s243 + $0x380] sm:$0xff] %v144
        %273 = vst [vmem:[%s243 + $0x388] sm:$0xff] %v144
        %274 = vst [vmem:[%s243 + $0x390] sm:$0xff] %v144
        %275 = vst [vmem:[%s243 + $0x398] sm:$0xff] %v144
        %s276 = sand.u32 %s52, 1
        %s277 = scalar_lea.sflag [#allocation4], %s276
        %s278 = sand.u32 %s52, 1
        %s279 = smul.addr %s278, 1024
        %s280 = scalar_lea.vmem [#allocation5], %s279
        // Predicated region
        $region29: #{tpu_custom_call.1} parent=23 // pred_check
          %p281 = pneg %p62
        $region30: #{tpu_custom_call.1} parent=23 // pred_check_branch
          %283 = sbr.rel (%p281) target = $region32
        $region31: #{tpu_custom_call.1} parent=23 // pred_region
          %s284 = smul.u32 8, %s18
          %s286 = ssub.s32 16384, 16384
          %287 = vsyncadd %s277, %s286
          %s288 = smul.addr %s284, 16
          %s289 = smul.addr %s288, 128
          %s290 = scalar_lea.hbm %s1, %s289
          %s291 = sshll.u32 %s280, 4
          %s292 = int_to_ptr.vmem [resolvable:$true] %s291
          %297 = dma.vmem_to_hbm [thread:$0]  %s292, 16384, %s290, %s277, 512, 512, 32
        $region32: #{tpu_custom_call.1} parent=23 // pred_fallthru
          _
      $region24: #{tpu_custom_call.1} parent=5 // pred_fallthru
        _
      %p298 = scmp.le.s32.totalorder 2, %s13
      // Predicated region
      $region33: #{tpu_custom_call.1} parent=5 // pred_check
        %p299 = pneg %p298
      $region34: #{tpu_custom_call.1} parent=5 // pred_check_branch
        %301 = sbr.rel (%p299) target = $region36
      $region35: #{tpu_custom_call.1} parent=5 // pred_region
        %s302 = ssub.s32 %s13, 2
        // Predicated region
        $region37: #{tpu_custom_call.1} parent=35 // pred_check
          %p303 = pneg %p68
        $region38: #{tpu_custom_call.1} parent=35 // pred_check_branch
          %305 = sbr.rel (%p303) target = $region40
        $region39: #{tpu_custom_call.1} parent=35 // pred_region
          %s306 = sand.u32 %s53, 1
          %s307 = scalar_lea.sflag [#allocation4], %s306
          %s308 = sand.u32 %s53, 1
          %s309 = smul.addr %s308, 1024
          %s310 = scalar_lea.vmem [#allocation5], %s309
          %311 = dma.done %s307, 16384
        $region40: #{tpu_custom_call.1} parent=35 // pred_fallthru
          _
      $region36: #{tpu_custom_call.1} parent=5 // pred_fallthru
        _
    $region6: #{tpu_custom_call.1} parent=1 // loop_footer
      %s17 = sadd.s32 1, %s13
    $region7: #{tpu_custom_call.1} parent=1 // loop_footer_branch
      %12 = sbr.rel target = $region3
    $region8: #{tpu_custom_call.1} parent=1 // loop_exit
      _
    %312 = vsyncpa [#allocation3], 1
    %s313 = scalar_lea.sflag [#allocation3], 1
    %314 = vsyncpa %s313, 1
    %315 = vsyncpa [#allocation4], 1
    %s316 = scalar_lea.sflag [#allocation4], 1
    %317 = vsyncpa %s316, 1

</llo_original>
